<compile_context>
chip_gen: v7x
topology: tpu7x:2x2x1
jax: 0.10.0
libtpu: 0.0.40
codegen_flags: <defaults>
</compile_context>

<pallas_src>
import functools

import jax
import jax.numpy as jnp
from jax.experimental import pallas as pl
from jax.experimental.pallas import tpu as pltpu

HIDDEN_SIZES = [256, 256]


def _round_up(x, m):
    return ((x + m - 1) // m) * m


def _cdiv(a, b):
    return -(-a // b)


def _dqln_kernel(x_ref, w1_ref, b1_ref, w2_ref, b2_ref, w3_ref, b3_ref, o_ref):
    # Fused 3-layer MLP on one batch tile. Matmuls in bf16 on the MXU with
    # f32 accumulation; bias add / ReLU in f32.
    x = x_ref[...].astype(jnp.bfloat16)                                # (TB, K_pad)

    h1 = jnp.dot(x, w1_ref[...], preferred_element_type=jnp.float32) + b1_ref[...]
    h1 = jnp.maximum(h1, 0.0).astype(jnp.bfloat16)                     # ReLU -> bf16 for MXU

    h2 = jnp.dot(h1, w2_ref[...], preferred_element_type=jnp.float32) + b2_ref[...]
    h2 = jnp.maximum(h2, 0.0).astype(jnp.bfloat16)

    out = jnp.dot(h2, w3_ref[...], preferred_element_type=jnp.float32) + b3_ref[...]
    o_ref[...] = out.astype(o_ref.dtype)                               # (TB, A_pad) lane-dense


@functools.partial(jax.jit, static_argnames=("n_actions", "batch_tile", "num_tc"))
def dqln_forward(x, kparams, *, n_actions, batch_tile=512, num_tc=1):
    """x: (B, n_observations) float32. kparams: pre-padded bf16/f32 params
    from prepare_kernel_params (padding hoisted out of the forward path)."""
    B, n_obs = x.shape
    w1, b1 = kparams["w1"], kparams["b1"]    # (K_pad, H1) bf16, (1, H1) f32
    w2, b2 = kparams["w2"], kparams["b2"]    # (H1, H2)  bf16,  (1, H2) f32
    w3, b3 = kparams["w3"], kparams["b3"]    # (H2, A_pad) bf16, (1, A_pad) f32
    K_pad, H1 = w1.shape
    H2 = w2.shape[1]
    A_pad = w3.shape[1]

    # ---- batch tiling: tile % 8 == 0, minimal zero-row padding, and on
    # multi-TC chips (v7x) at least num_tc grid steps so "parallel" actually
    # shards the batch across TensorCores. ----
    B8 = _round_up(B, 8)
    n_steps = max(_cdiv(B8, batch_tile), 1)
    if num_tc > 1 and n_steps < num_tc and B8 >= 8 * num_tc:
        n_steps = num_tc
    tile = _round_up(_cdiv(B8, n_steps), 8)
    B_pad = tile * n_steps

    # Only the (tiny) activation tensor is padded per call; weights are not.
    x_p = jnp.pad(x, ((0, B_pad - B), (0, K_pad - n_obs)))

    flops = 2 * B_pad * (K_pad * H1 + H1 * H2 + H2 * A_pad)
    bytes_accessed = (
        x_p.size * x_p.dtype.itemsize
        + sum(a.size * a.dtype.itemsize for a in (w1, b1, w2, b2, w3, b3))
        + B_pad * A_pad * 4
    )

    out_p = pl.pallas_call(
        _dqln_kernel,
        out_shape=jax.ShapeDtypeStruct((B_pad, A_pad), jnp.float32),
        grid_spec=pl.GridSpec(
            grid=(n_steps,),
            in_specs=[
                pl.BlockSpec((tile, K_pad), lambda i: (i, 0)),   # x: tiled along batch
                pl.BlockSpec(w1.shape, lambda i: (0, 0)),        # weights resident across steps
                pl.BlockSpec(b1.shape, lambda i: (0, 0)),
                pl.BlockSpec(w2.shape, lambda i: (0, 0)),
                pl.BlockSpec(b2.shape, lambda i: (0, 0)),
                pl.BlockSpec(w3.shape, lambda i: (0, 0)),
                pl.BlockSpec(b3.shape, lambda i: (0, 0)),
            ],
            out_specs=pl.BlockSpec((tile, A_pad), lambda i: (i, 0)),
        ),
        compiler_params=pltpu.CompilerParams(
            # batch tiles are independent -> shards across the 2 TCs on v7x
            dimension_semantics=("parallel",),
        ),
        cost_estimate=pl.CostEstimate(
            flops=flops, transcendentals=0, bytes_accessed=bytes_accessed
        ),
    )(x_p, w1, b1, w2, b2, w3, b3)

    # Slice away batch / lane padding.
    return out_p[:B, :n_actions]


def init_dqln_params(key, n_observations, n_actions):
    """Deterministic f32 init mimicking nn.Linear default (uniform +/- 1/sqrt(fan_in)).
    Weights stored transposed: (in_features, out_features)."""
    dims = [n_observations, HIDDEN_SIZES[0], HIDDEN_SIZES[1], n_actions]
    params = {}
    keys = jax.random.split(key, 6)
    for layer in range(3):
        fan_in, fan_out = dims[layer], dims[layer + 1]
        bound = 1.0 / (fan_in ** 0.5)
        params[f"w{layer + 1}"] = jax.random.uniform(
            keys[2 * layer], (fan_in, fan_out),
            minval=-bound, maxval=bound, dtype=jnp.float32)
        params[f"b{layer + 1}"] = jax.random.uniform(
            keys[2 * layer + 1], (1, fan_out),
            minval=-bound, maxval=bound, dtype=jnp.float32)
    return params


def prepare_kernel_params(params, n_observations, n_actions):
    """One-time prep (e.g. after each target-network sync), NOT per forward:
    pad to TPU-friendly shapes and cast weights to bf16 for the MXU.
    Biases stay f32 (bias add / ReLU run in f32)."""
    K_pad = _round_up(max(n_observations, 8), 8)          # contraction dim -> sublane multiple
    A_pad = _round_up(max(n_actions, 128), 128)           # output dim -> full 128 lanes
    w1 = jnp.pad(params["w1"], ((0, K_pad - n_observations), (0, 0))).astype(jnp.bfloat16)
    w2 = params["w2"].astype(jnp.bfloat16)
    w3 = jnp.pad(params["w3"], ((0, 0), (0, A_pad - n_actions))).astype(jnp.bfloat16)
    b3 = jnp.pad(params["b3"], ((0, 0), (0, A_pad - n_actions)))
    return {"w1": w1, "b1": params["b1"], "w2": w2, "b2": params["b2"],
            "w3": w3, "b3": b3}


def dqln_reference(x, params):
    h = jnp.maximum(x @ params["w1"] + params["b1"], 0.0)
    h = jnp.maximum(h @ params["w2"] + params["b2"], 0.0)
    return h @ params["w3"] + params["b3"]


def _detect_num_tensorcores():
    # v7x has 2 TensorCores per chip; v5e/v6e have 1. Best-effort heuristic.
    try:
        kind = jax.devices()[0].device_kind.lower()
        if "v7" in kind:
            return 2
    except Exception:
        pass
    return 1


if __name__ == "__main__":
    key = jax.random.PRNGKey(0)
    k_param, k_x1, k_x2 = jax.random.split(key, 3)

    n_observations = 4   # e.g. CartPole observation dim
    n_actions = 2        # e.g. CartPole action dim

    params = init_dqln_params(k_param, n_observations, n_actions)
    kparams = prepare_kernel_params(params, n_observations, n_actions)
    num_tc = _detect_num_tensorcores()

    # bf16 matmuls (f32 accumulation) vs f32 reference -> loose-ish tolerance.
    ATOL = 3e-2
    RTOL = 3e-2

    # Case 1: small, tile-aligned batch.
    x1 = jax.random.normal(k_x1, (32, n_observations), dtype=jnp.float32)
    out1 = jax.block_until_ready(
        dqln_forward(x1, kparams, n_actions=n_actions, num_tc=num_tc))
    ref1 = dqln_reference(x1, params)
    assert out1.shape == (32, n_actions)
    assert jnp.allclose(out1, ref1, atol=ATOL, rtol=RTOL), "mismatch vs JAX reference (case 1)"

    # Case 2: ragged batch (exercises tile selection / batch-row padding).
    x2 = jax.random.normal(k_x2, (37, n_observations), dtype=jnp.float32)
    out2 = jax.block_until_ready(
        dqln_forward(x2, kparams, n_actions=n_actions, num_tc=num_tc))
    ref2 = dqln_reference(x2, params)
    assert out2.shape == (37, n_actions)
    assert jnp.allclose(out2, ref2, atol=ATOL, rtol=RTOL), "mismatch vs JAX reference (case 2)"

    print("KERNEL_OK")
</pallas_src>

<mosaic_0001>
module attributes {stable_mosaic.version = 11 : i64} {
  func.func @_dqln_kernel(%arg0: i32, %arg1: memref<32x8xf32, #tpu.memory_space<vmem>>, %arg2: memref<8x256xbf16, #tpu.memory_space<vmem>>, %arg3: memref<1x256xf32, #tpu.memory_space<vmem>>, %arg4: memref<256x256xbf16, #tpu.memory_space<vmem>>, %arg5: memref<1x256xf32, #tpu.memory_space<vmem>>, %arg6: memref<256x128xbf16, #tpu.memory_space<vmem>>, %arg7: memref<1x128xf32, #tpu.memory_space<vmem>>, %arg8: memref<32x128xf32, #tpu.memory_space<vmem>>) attributes {dimension_semantics = [#tpu.dimension_semantics<parallel>], iteration_bounds = array<i64: 1>, scalar_prefetch = 0 : i64, scratch_operands = 0 : i64, tpu.core_type = #tpu.core_type<tc>, window_params = [{transform_indices = @transform_0, window_bounds = array<i64: 32, 8>}, {pipeline_mode = #tpu.pipeline_mode<synchronous>, transform_indices = @transform_1, window_bounds = array<i64: 8, 256>}, {pipeline_mode = #tpu.pipeline_mode<synchronous>, transform_indices = @transform_2, window_bounds = array<i64: 1, 256>}, {pipeline_mode = #tpu.pipeline_mode<synchronous>, transform_indices = @transform_3, window_bounds = array<i64: 256, 256>}, {pipeline_mode = #tpu.pipeline_mode<synchronous>, transform_indices = @transform_4, window_bounds = array<i64: 1, 256>}, {pipeline_mode = #tpu.pipeline_mode<synchronous>, transform_indices = @transform_5, window_bounds = array<i64: 256, 128>}, {pipeline_mode = #tpu.pipeline_mode<synchronous>, transform_indices = @transform_6, window_bounds = array<i64: 1, 128>}, {transform_indices = @transform_7, window_bounds = array<i64: 32, 128>}]} {
    %c0 = arith.constant 0 : index
    %c0_0 = arith.constant 0 : index
    %0 = vector.load %arg1[%c0, %c0_0] : memref<32x8xf32, #tpu.memory_space<vmem>>, vector<32x8xf32>
    %1 = arith.truncf %0 : vector<32x8xf32> to vector<32x8xbf16>
    %c0_1 = arith.constant 0 : index
    %c0_2 = arith.constant 0 : index
    %2 = vector.load %arg2[%c0_1, %c0_2] : memref<8x256xbf16, #tpu.memory_space<vmem>>, vector<8x256xbf16>
    %cst = arith.constant dense<0.000000e+00> : vector<32x256xf32>
    %3 = tpu.matmul %1, %2, %cst {dimension_numbers = #tpu.dot_dimension_numbers<[1], [0], [0], [1], [0, 0, 1, 1], [], []>} : vector<32x8xbf16>, vector<8x256xbf16>, vector<32x256xf32> -> vector<32x256xf32>
    %c0_3 = arith.constant 0 : index
    %c0_4 = arith.constant 0 : index
    %4 = vector.load %arg3[%c0_3, %c0_4] : memref<1x256xf32, #tpu.memory_space<vmem>>, vector<1x256xf32>
    %5 = vector.broadcast %4 : vector<1x256xf32> to vector<32x256xf32>
    %6 = arith.addf %3, %5 : vector<32x256xf32>
    %cst_5 = arith.constant 0.000000e+00 : f32
    %7 = vector.broadcast %cst_5 : f32 to vector<32x256xf32>
    %8 = arith.maximumf %6, %7 : vector<32x256xf32>
    %9 = arith.truncf %8 : vector<32x256xf32> to vector<32x256xbf16>
    %c0_6 = arith.constant 0 : index
    %c0_7 = arith.constant 0 : index
    %10 = vector.load %arg4[%c0_6, %c0_7] : memref<256x256xbf16, #tpu.memory_space<vmem>>, vector<256x256xbf16>
    %cst_8 = arith.constant dense<0.000000e+00> : vector<32x256xf32>
    %11 = tpu.matmul %9, %10, %cst_8 {dimension_numbers = #tpu.dot_dimension_numbers<[1], [0], [0], [1], [0, 0, 1, 1], [], []>} : vector<32x256xbf16>, vector<256x256xbf16>, vector<32x256xf32> -> vector<32x256xf32>
    %c0_9 = arith.constant 0 : index
    %c0_10 = arith.constant 0 : index
    %12 = vector.load %arg5[%c0_9, %c0_10] : memref<1x256xf32, #tpu.memory_space<vmem>>, vector<1x256xf32>
    %13 = vector.broadcast %12 : vector<1x256xf32> to vector<32x256xf32>
    %14 = arith.addf %11, %13 : vector<32x256xf32>
    %cst_11 = arith.constant 0.000000e+00 : f32
    %15 = vector.broadcast %cst_11 : f32 to vector<32x256xf32>
    %16 = arith.maximumf %14, %15 : vector<32x256xf32>
    %17 = arith.truncf %16 : vector<32x256xf32> to vector<32x256xbf16>
    %c0_12 = arith.constant 0 : index
    %c0_13 = arith.constant 0 : index
    %18 = vector.load %arg6[%c0_12, %c0_13] : memref<256x128xbf16, #tpu.memory_space<vmem>>, vector<256x128xbf16>
    %cst_14 = arith.constant dense<0.000000e+00> : vector<32x128xf32>
    %19 = tpu.matmul %17, %18, %cst_14 {dimension_numbers = #tpu.dot_dimension_numbers<[1], [0], [0], [1], [0, 0, 1, 1], [], []>} : vector<32x256xbf16>, vector<256x128xbf16>, vector<32x128xf32> -> vector<32x128xf32>
    %c0_15 = arith.constant 0 : index
    %c0_16 = arith.constant 0 : index
    %20 = vector.load %arg7[%c0_15, %c0_16] : memref<1x128xf32, #tpu.memory_space<vmem>>, vector<1x128xf32>
    %21 = vector.broadcast %20 : vector<1x128xf32> to vector<32x128xf32>
    %22 = arith.addf %19, %21 : vector<32x128xf32>
    %c0_17 = arith.constant 0 : index
    %c0_18 = arith.constant 0 : index
    %23 = vector.load %arg8[%c0_17, %c0_18] : memref<32x128xf32, #tpu.memory_space<vmem>>, vector<32x128xf32>
    tpu.vector_store %arg8[%c0_17, %c0_18], %22 {strides = array<i32>} : memref<32x128xf32, #tpu.memory_space<vmem>>, vector<32x128xf32>,
    return
  }
  func.func @transform_0(%arg0: i32) -> (i32, i32) {
    %c0_i32 = arith.constant 0 : i32
    %c0_i32_0 = arith.constant 0 : i32
    return %arg0, %c0_i32 : i32, i32
  }
  func.func @transform_1(%arg0: i32) -> (i32, i32) {
    %c0_i32 = arith.constant 0 : i32
    %c0_i32_0 = arith.constant 0 : i32
    %c0_i32_1 = arith.constant 0 : i32
    return %c0_i32, %c0_i32_0 : i32, i32
  }
  func.func @transform_2(%arg0: i32) -> (i32, i32) {
    %c0_i32 = arith.constant 0 : i32
    %c0_i32_0 = arith.constant 0 : i32
    %c0_i32_1 = arith.constant 0 : i32
    return %c0_i32, %c0_i32_0 : i32, i32
  }
  func.func @transform_3(%arg0: i32) -> (i32, i32) {
    %c0_i32 = arith.constant 0 : i32
    %c0_i32_0 = arith.constant 0 : i32
    %c0_i32_1 = arith.constant 0 : i32
    return %c0_i32, %c0_i32_0 : i32, i32
  }
  func.func @transform_4(%arg0: i32) -> (i32, i32) {
    %c0_i32 = arith.constant 0 : i32
    %c0_i32_0 = arith.constant 0 : i32
    %c0_i32_1 = arith.constant 0 : i32
    return %c0_i32, %c0_i32_0 : i32, i32
  }
  func.func @transform_5(%arg0: i32) -> (i32, i32) {
    %c0_i32 = arith.constant 0 : i32
    %c0_i32_0 = arith.constant 0 : i32
    %c0_i32_1 = arith.constant 0 : i32
    return %c0_i32, %c0_i32_0 : i32, i32
  }
  func.func @transform_6(%arg0: i32) -> (i32, i32) {
    %c0_i32 = arith.constant 0 : i32
    %c0_i32_0 = arith.constant 0 : i32
    %c0_i32_1 = arith.constant 0 : i32
    return %c0_i32, %c0_i32_0 : i32, i32
  }
  func.func @transform_7(%arg0: i32) -> (i32, i32) {
    %c0_i32 = arith.constant 0 : i32
    %c0_i32_0 = arith.constant 0 : i32
    return %arg0, %c0_i32 : i32, i32
  }
}

</mosaic_0001>

<llo_original>
// kernel: dqln_forward.1
$region0: #{dqln_forward.1}
  #allocation0 [shape = 'u32[]', space=smem, size = 0x4, offset = 0x4, fixed_abs, tag = 'smem constant byte address 0x4 - core index']
  #allocation1 [shape = 'u32[144,128]{1,0:T(1,128)}', space=vmem, size = 0x12000, scoped, tag = 'internal scratch']
  %s0 = inlined_call_operand.vmem [shape: f32[32,8], index: 0, kind: input, shape index: {}]
  %s1 = inlined_call_operand.vmem [shape: bf16[8,256], index: 1, kind: input, shape index: {}]
  %s2 = inlined_call_operand.vmem [shape: f32[1,256], index: 2, kind: input, shape index: {}]
  %s3 = inlined_call_operand.hbm [shape: bf16[256,256], index: 3, kind: input, shape index: {}]
  %s4 = inlined_call_operand.vmem [shape: f32[1,256], index: 4, kind: input, shape index: {}]
  %s5 = inlined_call_operand.hbm [shape: bf16[256,128], index: 5, kind: input, shape index: {}]
  %s6 = inlined_call_operand.vmem [shape: f32[1,128], index: 6, kind: input, shape index: {}]
  %s7 = inlined_call_operand.vmem [shape: f32[32,128], index: 7, kind: output, shape index: {}]
  %s8 = sld [smem:[#allocation0]]
  $region46: #{dqln_forward.1} parent=0
    _
  %s10 = ssub.s32 1, %s8
  %s11 = scalar_select 0, %s10, %s8
  $region1: #{dqln_forward.1} parent=0
    #allocation2 [shape = 'u8[131072]{0}', space=vmem, size = 0x20000, scoped, tag = 'input window, operand 3, single buffered']
    #allocation3 [shape = 's32[1]{0}', space=sflag, size = 0x4, scoped, tag = 'scoped memory for dqln_forward.1']
    #allocation4 [shape = 'u8[65536]{0}', space=vmem, size = 0x10000, scoped, tag = 'input window, operand 5, single buffered']
    #allocation5 [shape = 's32[1]{0}', space=sflag, size = 0x4, scoped, tag = 'scoped memory for dqln_forward.1']
    %12 = vsyncpa [#allocation3], 0
    %13 = vsyncpa [#allocation5], 0
    // Predicated region
    $region2: #{dqln_forward.1} parent=1 // pred_check
      _
    $region3: #{dqln_forward.1} parent=1 // pred_check_branch
      %15 = sbr.rel (0) target = $region5
    $region4: #{dqln_forward.1} parent=1 // pred_region
      _
    $region5: #{dqln_forward.1} parent=1 // pred_fallthru
      _
    // Predicated region
    $region6: #{dqln_forward.1} parent=1 // pred_check
      _
    $region7: #{dqln_forward.1} parent=1 // pred_check_branch
      %17 = sbr.rel (0) target = $region9
    $region8: #{dqln_forward.1} parent=1 // pred_region
      _
    $region9: #{dqln_forward.1} parent=1 // pred_fallthru
      _
    // Predicated region
    $region10: #{dqln_forward.1} parent=1 // pred_check
      _
    $region11: #{dqln_forward.1} parent=1 // pred_check_branch
      %19 = sbr.rel (0) target = $region13
    $region12: #{dqln_forward.1} parent=1 // pred_region
      _
    $region13: #{dqln_forward.1} parent=1 // pred_fallthru
      _
    // Predicated region
    $region14: #{dqln_forward.1} parent=1 // pred_check
      _
    $region15: #{dqln_forward.1} parent=1 // pred_check_branch
      %21 = sbr.rel (0) target = $region17
    $region16: #{dqln_forward.1} parent=1 // pred_region
      %s23 = ssub.s32 4096, 4096
      %24 = vsyncadd [#allocation3], %s23
      %s25 = sshll.u32 [#allocation2], 4
      %s26 = int_to_ptr.vmem [resolvable:$true] %s25
      %31 = dma.hbm_to_vmem [thread:$0]  %s3, 4096, %s26, [#allocation3], 128, 128, 8
    $region17: #{dqln_forward.1} parent=1 // pred_fallthru
      _
    // Predicated region
    $region18: #{dqln_forward.1} parent=1 // pred_check
      _
    $region19: #{dqln_forward.1} parent=1 // pred_check_branch
      %33 = sbr.rel (0) target = $region21
    $region20: #{dqln_forward.1} parent=1 // pred_region
      _
    $region21: #{dqln_forward.1} parent=1 // pred_fallthru
      _
    // Predicated region
    $region22: #{dqln_forward.1} parent=1 // pred_check
      _
    $region23: #{dqln_forward.1} parent=1 // pred_check_branch
      %35 = sbr.rel (0) target = $region25
    $region24: #{dqln_forward.1} parent=1 // pred_region
      %s37 = ssub.s32 2048, 2048
      %38 = vsyncadd [#allocation5], %s37
      %s39 = sshll.u32 [#allocation4], 4
      %s40 = int_to_ptr.vmem [resolvable:$true] %s39
      %45 = dma.hbm_to_vmem [thread:$0]  %s5, 2048, %s40, [#allocation5], 64, 64, 4
    $region25: #{dqln_forward.1} parent=1 // pred_fallthru
      _
    // Predicated region
    $region26: #{dqln_forward.1} parent=1 // pred_check
      _
    $region27: #{dqln_forward.1} parent=1 // pred_check_branch
      %47 = sbr.rel (0) target = $region29
    $region28: #{dqln_forward.1} parent=1 // pred_region
      _
    $region29: #{dqln_forward.1} parent=1 // pred_fallthru
      _
    // Predicated region
    $region30: #{dqln_forward.1} parent=1 // pred_check
      _
    $region31: #{dqln_forward.1} parent=1 // pred_check_branch
      %49 = sbr.rel (0) target = $region33
    $region32: #{dqln_forward.1} parent=1 // pred_region
      %50 = dma.done [#allocation3], 4096
    $region33: #{dqln_forward.1} parent=1 // pred_fallthru
      _
    // Predicated region
    $region34: #{dqln_forward.1} parent=1 // pred_check
      _
    $region35: #{dqln_forward.1} parent=1 // pred_check_branch
      %52 = sbr.rel (0) target = $region37
    $region36: #{dqln_forward.1} parent=1 // pred_region
      %53 = dma.done [#allocation5], 2048
    $region37: #{dqln_forward.1} parent=1 // pred_fallthru
      _
    %v55 = vld [vmem:[%s0] sm:$0xff]
    %v56 = vld [vmem:[%s0 + $0x8] sm:$0xff]
    %v57 = vld [vmem:[%s0 + $0x10] sm:$0xff]
    %v58 = vld [vmem:[%s0 + $0x18] sm:$0xff]
    %v59 = vpack.c.bf16 %v56, %v55
    %v60 = vpack.c.bf16 %v58, %v57
    %v61 = vld [vmem:[%s1] sm:$0xff]
    %v62 = vld [vmem:[%s2] sm:$0x3]
    %v64 = vlaneseq
    %v65 = vshrl.u32 %v64, 7
    %v66 = vsub.s32 0, %v65
    %v67 = vrot.slane %v62, %v66
    %v68 = vlaneseq
    %v69 = vshrl.u32 %v68, 7
    %v70 = vsub.s32 1, %v69
    %v71 = vrot.slane %v62, %v70
    %v75 = vunpack.c.l.b16 %v61
    %v76 = vunpack.c.h.b16 %v61
    %v77 = vpack.c.b16 %v75, %v75
    %v78 = vpack.c.b16 %v76, %v76
    %vm79 = vcmask 64512
    %v81 = vsel %vm79, %v59, 0
    %v84 = vsel %vm79, %v60, 0
    %vm86 = vcmask 1043456
    %v88 = vsel %vm86, %v77, 0
    %v91 = vsel %vm86, %v78, 0
    %93 = vmatprep.subr.bf16.mxu0 %v91
    %94 = vmatpush1.bf16.msra.mxu0 %v88
    %95 = vmatprep.subr.bf16.mxu0 0
    %96 = vmatpush1.bf16.msra.mxu0 0
    %97 = vmatprep.subr.bf16.mxu0 0
    %98 = vmatpush1.bf16.msra.mxu0 0
    %99 = vmatprep.subr.bf16.mxu0 0
    %100 = vmatpush1.bf16.msra.mxu0 0
    %101 = vmatprep.subr.bf16.mxu0 0
    %102 = vmatpush1.bf16.msra.mxu0 0
    %103 = vmatprep.subr.bf16.mxu0 0
    %104 = vmatpush1.bf16.msra.mxu0 0
    %105 = vmatprep.subr.bf16.mxu0 0
    %106 = vmatpush1.bf16.msra.mxu0 0
    %107 = vmatprep.subr.bf16.mxu0 0
    %108 = vmatpush1.bf16.msra.mxu0 0
    %109 = vmatprep.subr.bf16.mxu0 0
    %110 = vmatpush1.bf16.msra.mxu0 0
    %111 = vmatprep.subr.bf16.mxu0 0
    %112 = vmatpush1.bf16.msra.mxu0 0
    %113 = vmatprep.subr.bf16.mxu0 0
    %114 = vmatpush1.bf16.msra.mxu0 0
    %115 = vmatprep.subr.bf16.mxu0 0
    %116 = vmatpush1.bf16.msra.mxu0 0
    %117 = vmatprep.subr.bf16.mxu0 0
    %118 = vmatpush1.bf16.msra.mxu0 0
    %119 = vmatprep.subr.bf16.mxu0 0
    %120 = vmatpush1.bf16.msra.mxu0 0
    %121 = vmatprep.subr.bf16.mxu0 0
    %122 = vmatpush1.bf16.msra.mxu0 0
    %123 = vmatprep.subr.bf16.mxu0 0
    %124 = vmatpush1.bf16.msra.mxu0 0
    %125 = vmatprep.mubr.bf16.mxu0 0
    %126 = vmatmul.mubr.bf16.gmra.mrb[0].mxu0 %v81
    %v127 = vpop.f32.mrb[0].mxu0
    %v128 = vadd.f32 %v67, %v127
    %v129 = vpop.f32.mrb[0].mxu0
    %v130 = vadd.f32 %v71, %v129
    %v131 = vpop.f32.mrb[0].mxu0
    %v132 = vadd.f32 %v67, %v131
    %v133 = vpop.f32.mrb[0].mxu0
    %v134 = vadd.f32 %v71, %v133
    %135 = vmatprep.mubr.bf16.mxu0 0
    %136 = vmatmul.mubr.bf16.gmra.mrb[0].mxu0 %v84
    %v137 = vpop.f32.mrb[0].mxu0
    %v138 = vadd.f32 %v67, %v137
    %v139 = vpop.f32.mrb[0].mxu0
    %v140 = vadd.f32 %v71, %v139
    %v141 = vpop.f32.mrb[0].mxu0
    %v142 = vadd.f32 %v67, %v141
    %v143 = vpop.f32.mrb[0].mxu0
    %v144 = vadd.f32 %v71, %v143
    %145 = vdwg.mxu0
    %v146 = vmax.f32 %v128, 0.0
    %v147 = vmax.f32 %v130, 0.0
    %v148 = vmax.f32 %v132, 0.0
    %v149 = vmax.f32 %v134, 0.0
    %v150 = vmax.f32 %v138, 0.0
    %v151 = vmax.f32 %v140, 0.0
    %v152 = vmax.f32 %v142, 0.0
    %v153 = vmax.f32 %v144, 0.0
    %v154 = vpack.c.bf16 %v148, %v146
    %v155 = vpack.c.bf16 %v149, %v147
    %v156 = vpack.c.bf16 %v152, %v150
    %v157 = vpack.c.bf16 %v153, %v151
    %v158 = vld [vmem:[#allocation2] sm:$0xff]
    %v159 = vld [vmem:[#allocation2 + $0x8] sm:$0xff]
    %v160 = vld [vmem:[#allocation2 + $0x10] sm:$0xff]
    %v161 = vld [vmem:[#allocation2 + $0x18] sm:$0xff]
    %v162 = vld [vmem:[#allocation2 + $0x20] sm:$0xff]
    %v163 = vld [vmem:[#allocation2 + $0x28] sm:$0xff]
    %v164 = vld [vmem:[#allocation2 + $0x30] sm:$0xff]
    %v165 = vld [vmem:[#allocation2 + $0x38] sm:$0xff]
    %v166 = vld [vmem:[#allocation2 + $0x40] sm:$0xff]
    %v167 = vld [vmem:[#allocation2 + $0x48] sm:$0xff]
    %v168 = vld [vmem:[#allocation2 + $0x50] sm:$0xff]
    %v169 = vld [vmem:[#allocation2 + $0x58] sm:$0xff]
    %v170 = vld [vmem:[#allocation2 + $0x60] sm:$0xff]
    %v171 = vld [vmem:[#allocation2 + $0x68] sm:$0xff]
    %v172 = vld [vmem:[#allocation2 + $0x70] sm:$0xff]
    %v173 = vld [vmem:[#allocation2 + $0x78] sm:$0xff]
    %v174 = vld [vmem:[#allocation2 + $0x80] sm:$0xff]
    %v175 = vld [vmem:[#allocation2 + $0x88] sm:$0xff]
    %v176 = vld [vmem:[#allocation2 + $0x90] sm:$0xff]
    %v177 = vld [vmem:[#allocation2 + $0x98] sm:$0xff]
    %v178 = vld [vmem:[#allocation2 + $0xa0] sm:$0xff]
    %v179 = vld [vmem:[#allocation2 + $0xa8] sm:$0xff]
    %v180 = vld [vmem:[#allocation2 + $0xb0] sm:$0xff]
    %v181 = vld [vmem:[#allocation2 + $0xb8] sm:$0xff]
    %v182 = vld [vmem:[#allocation2 + $0xc0] sm:$0xff]
    %v183 = vld [vmem:[#allocation2 + $0xc8] sm:$0xff]
    %v184 = vld [vmem:[#allocation2 + $0xd0] sm:$0xff]
    %v185 = vld [vmem:[#allocation2 + $0xd8] sm:$0xff]
    %v186 = vld [vmem:[#allocation2 + $0xe0] sm:$0xff]
    %v187 = vld [vmem:[#allocation2 + $0xe8] sm:$0xff]
    %v188 = vld [vmem:[#allocation2 + $0xf0] sm:$0xff]
    %v189 = vld [vmem:[#allocation2 + $0xf8] sm:$0xff]
    %v190 = vld [vmem:[%s4] sm:$0x3]
    %v192 = vlaneseq
    %v193 = vshrl.u32 %v192, 7
    %v194 = vsub.s32 0, %v193
    %v195 = vrot.slane %v190, %v194
    %v196 = vlaneseq
    %v197 = vshrl.u32 %v196, 7
    %v198 = vsub.s32 1, %v197
    %v199 = vrot.slane %v190, %v198
    %v234 = vunpack.c.l.b16 %v158
    %v235 = vunpack.c.h.b16 %v158
    %v236 = vunpack.c.l.b16 %v159
    %v237 = vunpack.c.h.b16 %v159
    %v238 = vunpack.c.l.b16 %v160
    %v239 = vunpack.c.h.b16 %v160
    %v240 = vunpack.c.l.b16 %v161
    %v241 = vunpack.c.h.b16 %v161
    %v242 = vunpack.c.l.b16 %v162
    %v243 = vunpack.c.h.b16 %v162
    %v244 = vunpack.c.l.b16 %v163
    %v245 = vunpack.c.h.b16 %v163
    %v246 = vunpack.c.l.b16 %v164
    %v247 = vunpack.c.h.b16 %v164
    %v248 = vunpack.c.l.b16 %v165
    %v249 = vunpack.c.h.b16 %v165
    %v250 = vunpack.c.l.b16 %v166
    %v251 = vunpack.c.h.b16 %v166
    %v252 = vunpack.c.l.b16 %v167
    %v253 = vunpack.c.h.b16 %v167
    %v254 = vunpack.c.l.b16 %v168
    %v255 = vunpack.c.h.b16 %v168
    %v256 = vunpack.c.l.b16 %v169
    %v257 = vunpack.c.h.b16 %v169
    %v258 = vunpack.c.l.b16 %v170
    %v259 = vunpack.c.h.b16 %v170
    %v260 = vunpack.c.l.b16 %v171
    %v261 = vunpack.c.h.b16 %v171
    %v262 = vunpack.c.l.b16 %v172
    %v263 = vunpack.c.h.b16 %v172
    %v264 = vunpack.c.l.b16 %v173
    %v265 = vunpack.c.h.b16 %v173
    %v266 = vunpack.c.l.b16 %v174
    %v267 = vunpack.c.h.b16 %v174
    %v268 = vunpack.c.l.b16 %v175
    %v269 = vunpack.c.h.b16 %v175
    %v270 = vunpack.c.l.b16 %v176
    %v271 = vunpack.c.h.b16 %v176
    %v272 = vunpack.c.l.b16 %v177
    %v273 = vunpack.c.h.b16 %v177
    %v274 = vunpack.c.l.b16 %v178
    %v275 = vunpack.c.h.b16 %v178
    %v276 = vunpack.c.l.b16 %v179
    %v277 = vunpack.c.h.b16 %v179
    %v278 = vunpack.c.l.b16 %v180
    %v279 = vunpack.c.h.b16 %v180
    %v280 = vunpack.c.l.b16 %v181
    %v281 = vunpack.c.h.b16 %v181
    %v282 = vunpack.c.l.b16 %v182
    %v283 = vunpack.c.h.b16 %v182
    %v284 = vunpack.c.l.b16 %v183
    %v285 = vunpack.c.h.b16 %v183
    %v286 = vunpack.c.l.b16 %v184
    %v287 = vunpack.c.h.b16 %v184
    %v288 = vunpack.c.l.b16 %v185
    %v289 = vunpack.c.h.b16 %v185
    %v290 = vunpack.c.l.b16 %v186
    %v291 = vunpack.c.h.b16 %v186
    %v292 = vunpack.c.l.b16 %v187
    %v293 = vunpack.c.h.b16 %v187
    %v294 = vunpack.c.l.b16 %v188
    %v295 = vunpack.c.h.b16 %v188
    %v296 = vunpack.c.l.b16 %v189
    %v297 = vunpack.c.h.b16 %v189
    %v298 = vpack.c.b16 %v236, %v234
    %v299 = vpack.c.b16 %v237, %v235
    %v300 = vpack.c.b16 %v240, %v238
    %v301 = vpack.c.b16 %v241, %v239
    %v302 = vpack.c.b16 %v244, %v242
    %v303 = vpack.c.b16 %v245, %v243
    %v304 = vpack.c.b16 %v248, %v246
    %v305 = vpack.c.b16 %v249, %v247
    %v306 = vpack.c.b16 %v252, %v250
    %v307 = vpack.c.b16 %v253, %v251
    %v308 = vpack.c.b16 %v256, %v254
    %v309 = vpack.c.b16 %v257, %v255
    %v310 = vpack.c.b16 %v260, %v258
    %v311 = vpack.c.b16 %v261, %v259
    %v312 = vpack.c.b16 %v264, %v262
    %v313 = vpack.c.b16 %v265, %v263
    %v314 = vpack.c.b16 %v268, %v266
    %v315 = vpack.c.b16 %v269, %v267
    %v316 = vpack.c.b16 %v272, %v270
    %v317 = vpack.c.b16 %v273, %v271
    %v318 = vpack.c.b16 %v276, %v274
    %v319 = vpack.c.b16 %v277, %v275
    %v320 = vpack.c.b16 %v280, %v278
    %v321 = vpack.c.b16 %v281, %v279
    %v322 = vpack.c.b16 %v284, %v282
    %v323 = vpack.c.b16 %v285, %v283
    %v324 = vpack.c.b16 %v288, %v286
    %v325 = vpack.c.b16 %v289, %v287
    %v326 = vpack.c.b16 %v292, %v290
    %v327 = vpack.c.b16 %v293, %v291
    %v328 = vpack.c.b16 %v296, %v294
    %v329 = vpack.c.b16 %v297, %v295
    %362 = vmatprep.subr.bf16.mxu0 %v299
    %363 = vmatpush1.bf16.msra.mxu0 %v298
    %364 = vmatprep.subr.bf16.mxu0 %v301
    %365 = vmatpush1.bf16.msra.mxu0 %v300
    %366 = vmatprep.subr.bf16.mxu0 %v303
    %367 = vmatpush1.bf16.msra.mxu0 %v302
    %368 = vmatprep.subr.bf16.mxu0 %v305
    %369 = vmatpush1.bf16.msra.mxu0 %v304
    %370 = vmatprep.subr.bf16.mxu0 %v307
    %371 = vmatpush1.bf16.msra.mxu0 %v306
    %372 = vmatprep.subr.bf16.mxu0 %v309
    %373 = vmatpush1.bf16.msra.mxu0 %v308
    %374 = vmatprep.subr.bf16.mxu0 %v311
    %375 = vmatpush1.bf16.msra.mxu0 %v310
    %376 = vmatprep.subr.bf16.mxu0 %v313
    %377 = vmatpush1.bf16.msra.mxu0 %v312
    %378 = vmatprep.subr.bf16.mxu0 %v315
    %379 = vmatpush1.bf16.msra.mxu0 %v314
    %380 = vmatprep.subr.bf16.mxu0 %v317
    %381 = vmatpush1.bf16.msra.mxu0 %v316
    %382 = vmatprep.subr.bf16.mxu0 %v319
    %383 = vmatpush1.bf16.msra.mxu0 %v318
    %384 = vmatprep.subr.bf16.mxu0 %v321
    %385 = vmatpush1.bf16.msra.mxu0 %v320
    %386 = vmatprep.subr.bf16.mxu0 %v323
    %387 = vmatpush1.bf16.msra.mxu0 %v322
    %388 = vmatprep.subr.bf16.mxu0 %v325
    %389 = vmatpush1.bf16.msra.mxu0 %v324
    %390 = vmatprep.subr.bf16.mxu0 %v327
    %391 = vmatpush1.bf16.msra.mxu0 %v326
    %392 = vmatprep.subr.bf16.mxu0 %v329
    %393 = vmatpush1.bf16.msra.mxu0 %v328
    %394 = vmatprep.mubr.bf16.mxu0 %v155
    %395 = vmatmul.mubr.bf16.gmra.mrb[0].mxu0 %v154
    %v396 = vpop.f32.mrb[0].mxu0
    %v397 = vadd.f32 %v195, %v396
    %v398 = vpop.f32.mrb[0].mxu0
    %v399 = vadd.f32 %v199, %v398
    %v400 = vpop.f32.mrb[0].mxu0
    %v401 = vadd.f32 %v195, %v400
    %v402 = vpop.f32.mrb[0].mxu0
    %v403 = vadd.f32 %v199, %v402
    %404 = vmatprep.mubr.bf16.mxu0 %v157
    %405 = vmatmul.mubr.bf16.gmra.mrb[0].mxu0 %v156
    %v406 = vpop.f32.mrb[0].mxu0
    %v407 = vadd.f32 %v195, %v406
    %v408 = vpop.f32.mrb[0].mxu0
    %v409 = vadd.f32 %v199, %v408
    %v410 = vpop.f32.mrb[0].mxu0
    %v411 = vadd.f32 %v195, %v410
    %v412 = vpop.f32.mrb[0].mxu0
    %v413 = vadd.f32 %v199, %v412
    %414 = vdwg.mxu0
    %v415 = vmax.f32 %v397, 0.0
    %v416 = vmax.f32 %v399, 0.0
    %v417 = vmax.f32 %v401, 0.0
    %v418 = vmax.f32 %v403, 0.0
    %v419 = vmax.f32 %v407, 0.0
    %v420 = vmax.f32 %v409, 0.0
    %v421 = vmax.f32 %v411, 0.0
    %v422 = vmax.f32 %v413, 0.0
    %v423 = vpack.c.bf16 %v417, %v415
    %v424 = vpack.c.bf16 %v418, %v416
    %v425 = vpack.c.bf16 %v421, %v419
    %v426 = vpack.c.bf16 %v422, %v420
    %v427 = vld [vmem:[#allocation4] sm:$0xf]
    %v428 = vld [vmem:[#allocation4 + $0x4] sm:$0xf]
    %v429 = vld [vmem:[#allocation4 + $0x8] sm:$0xf]
    %v430 = vld [vmem:[#allocation4 + $0xc] sm:$0xf]
    %v431 = vld [vmem:[#allocation4 + $0x10] sm:$0xf]
    %v432 = vld [vmem:[#allocation4 + $0x14] sm:$0xf]
    %v433 = vld [vmem:[#allocation4 + $0x18] sm:$0xf]
    %v434 = vld [vmem:[#allocation4 + $0x1c] sm:$0xf]
    %v435 = vld [vmem:[#allocation4 + $0x20] sm:$0xf]
    %v436 = vld [vmem:[#allocation4 + $0x24] sm:$0xf]
    %v437 = vld [vmem:[#allocation4 + $0x28] sm:$0xf]
    %v438 = vld [vmem:[#allocation4 + $0x2c] sm:$0xf]
    %v439 = vld [vmem:[#allocation4 + $0x30] sm:$0xf]
    %v440 = vld [vmem:[#allocation4 + $0x34] sm:$0xf]
    %v441 = vld [vmem:[#allocation4 + $0x38] sm:$0xf]
    %v442 = vld [vmem:[#allocation4 + $0x3c] sm:$0xf]
    %v443 = vld [vmem:[#allocation4 + $0x40] sm:$0xf]
    %v444 = vld [vmem:[#allocation4 + $0x44] sm:$0xf]
    %v445 = vld [vmem:[#allocation4 + $0x48] sm:$0xf]
    %v446 = vld [vmem:[#allocation4 + $0x4c] sm:$0xf]
    %v447 = vld [vmem:[#allocation4 + $0x50] sm:$0xf]
    %v448 = vld [vmem:[#allocation4 + $0x54] sm:$0xf]
    %v449 = vld [vmem:[#allocation4 + $0x58] sm:$0xf]
    %v450 = vld [vmem:[#allocation4 + $0x5c] sm:$0xf]
    %v451 = vld [vmem:[#allocation4 + $0x60] sm:$0xf]
    %v452 = vld [vmem:[#allocation4 + $0x64] sm:$0xf]
    %v453 = vld [vmem:[#allocation4 + $0x68] sm:$0xf]
    %v454 = vld [vmem:[#allocation4 + $0x6c] sm:$0xf]
    %v455 = vld [vmem:[#allocation4 + $0x70] sm:$0xf]
    %v456 = vld [vmem:[#allocation4 + $0x74] sm:$0xf]
    %v457 = vld [vmem:[#allocation4 + $0x78] sm:$0xf]
    %v458 = vld [vmem:[#allocation4 + $0x7c] sm:$0xf]
    %v459 = vld [vmem:[%s6] sm:$0x1]
    %v461 = vlaneseq
    %v462 = vshrl.u32 %v461, 7
    %v463 = vsub.s32 0, %v462
    %v464 = vrot.slane %v459, %v463
    %v498 = vunpack.c.l.b16 %v427
    %v499 = vunpack.c.l.b16 %v428
    %v500 = vunpack.c.l.b16 %v429
    %v501 = vunpack.c.l.b16 %v430
    %v502 = vunpack.c.l.b16 %v431
    %v503 = vunpack.c.l.b16 %v432
    %v504 = vunpack.c.l.b16 %v433
    %v505 = vunpack.c.l.b16 %v434
    %v506 = vunpack.c.l.b16 %v435
    %v507 = vunpack.c.l.b16 %v436
    %v508 = vunpack.c.l.b16 %v437
    %v509 = vunpack.c.l.b16 %v438
    %v510 = vunpack.c.l.b16 %v439
    %v511 = vunpack.c.l.b16 %v440
    %v512 = vunpack.c.l.b16 %v441
    %v513 = vunpack.c.l.b16 %v442
    %v514 = vunpack.c.l.b16 %v443
    %v515 = vunpack.c.l.b16 %v444
    %v516 = vunpack.c.l.b16 %v445
    %v517 = vunpack.c.l.b16 %v446
    %v518 = vunpack.c.l.b16 %v447
    %v519 = vunpack.c.l.b16 %v448
    %v520 = vunpack.c.l.b16 %v449
    %v521 = vunpack.c.l.b16 %v450
    %v522 = vunpack.c.l.b16 %v451
    %v523 = vunpack.c.l.b16 %v452
    %v524 = vunpack.c.l.b16 %v453
    %v525 = vunpack.c.l.b16 %v454
    %v526 = vunpack.c.l.b16 %v455
    %v527 = vunpack.c.l.b16 %v456
    %v528 = vunpack.c.l.b16 %v457
    %v529 = vunpack.c.l.b16 %v458
    %v530 = vpack.c.b16 %v499, %v498
    %v531 = vpack.c.b16 %v501, %v500
    %v532 = vpack.c.b16 %v503, %v502
    %v533 = vpack.c.b16 %v505, %v504
    %v534 = vpack.c.b16 %v507, %v506
    %v535 = vpack.c.b16 %v509, %v508
    %v536 = vpack.c.b16 %v511, %v510
    %v537 = vpack.c.b16 %v513, %v512
    %v538 = vpack.c.b16 %v515, %v514
    %v539 = vpack.c.b16 %v517, %v516
    %v540 = vpack.c.b16 %v519, %v518
    %v541 = vpack.c.b16 %v521, %v520
    %v542 = vpack.c.b16 %v523, %v522
    %v543 = vpack.c.b16 %v525, %v524
    %v544 = vpack.c.b16 %v527, %v526
    %v545 = vpack.c.b16 %v529, %v528
    %562 = vmatprep.subr.bf16.mxu0 0
    %563 = vmatpush1.bf16.msra.mxu0 %v530
    %564 = vmatprep.subr.bf16.mxu0 0
    %565 = vmatpush1.bf16.msra.mxu0 %v531
    %566 = vmatprep.subr.bf16.mxu0 0
    %567 = vmatpush1.bf16.msra.mxu0 %v532
    %568 = vmatprep.subr.bf16.mxu0 0
    %569 = vmatpush1.bf16.msra.mxu0 %v533
    %570 = vmatprep.subr.bf16.mxu0 0
    %571 = vmatpush1.bf16.msra.mxu0 %v534
    %572 = vmatprep.subr.bf16.mxu0 0
    %573 = vmatpush1.bf16.msra.mxu0 %v535
    %574 = vmatprep.subr.bf16.mxu0 0
    %575 = vmatpush1.bf16.msra.mxu0 %v536
    %576 = vmatprep.subr.bf16.mxu0 0
    %577 = vmatpush1.bf16.msra.mxu0 %v537
    %578 = vmatprep.subr.bf16.mxu0 0
    %579 = vmatpush1.bf16.msra.mxu0 %v538
    %580 = vmatprep.subr.bf16.mxu0 0
    %581 = vmatpush1.bf16.msra.mxu0 %v539
    %582 = vmatprep.subr.bf16.mxu0 0
    %583 = vmatpush1.bf16.msra.mxu0 %v540
    %584 = vmatprep.subr.bf16.mxu0 0
    %585 = vmatpush1.bf16.msra.mxu0 %v541
    %586 = vmatprep.subr.bf16.mxu0 0
    %587 = vmatpush1.bf16.msra.mxu0 %v542
    %588 = vmatprep.subr.bf16.mxu0 0
    %589 = vmatpush1.bf16.msra.mxu0 %v543
    %590 = vmatprep.subr.bf16.mxu0 0
    %591 = vmatpush1.bf16.msra.mxu0 %v544
    %592 = vmatprep.subr.bf16.mxu0 0
    %593 = vmatpush1.bf16.msra.mxu0 %v545
    %594 = vmatprep.mubr.bf16.mxu0 %v424
    %595 = vmatmul.mubr.bf16.gmra.mrb[0].mxu0 %v423
    %v596 = vpop.f32.mrb[0].mxu0
    %v597 = vadd.f32 %v464, %v596
    %v598 = vpop.f32.mrb[0].mxu0
    %v599 = vpop.f32.mrb[0].mxu0
    %v600 = vadd.f32 %v464, %v599
    %v601 = vpop.f32.mrb[0].mxu0
    %602 = vmatprep.mubr.bf16.mxu0 %v426
    %603 = vmatmul.mubr.bf16.gmra.mrb[0].mxu0 %v425
    %v604 = vpop.f32.mrb[0].mxu0
    %v605 = vadd.f32 %v464, %v604
    %v606 = vpop.f32.mrb[0].mxu0
    %v607 = vpop.f32.mrb[0].mxu0
    %v608 = vadd.f32 %v464, %v607
    %v609 = vpop.f32.mrb[0].mxu0
    %610 = vdwg.mxu0
    %611 = vst [vmem:[%s7] sm:$0xff] %v597
    %612 = vst [vmem:[%s7 + $0x8] sm:$0xff] %v600
    %613 = vst [vmem:[%s7 + $0x10] sm:$0xff] %v605
    %614 = vst [vmem:[%s7 + $0x18] sm:$0xff] %v608
    // Predicated region
    $region38: #{dqln_forward.1} parent=1 // pred_check
      _
    $region39: #{dqln_forward.1} parent=1 // pred_check_branch
      %616 = sbr.rel (0) target = $region41
    $region40: #{dqln_forward.1} parent=1 // pred_region
      _
    $region41: #{dqln_forward.1} parent=1 // pred_fallthru
      _
    // Predicated region
    $region42: #{dqln_forward.1} parent=1 // pred_check
      _
    $region43: #{dqln_forward.1} parent=1 // pred_check_branch
      %618 = sbr.rel (0) target = $region45
    $region44: #{dqln_forward.1} parent=1 // pred_region
      _
    $region45: #{dqln_forward.1} parent=1 // pred_fallthru
      _
    %619 = vsyncpa [#allocation3], 1
    %620 = vsyncpa [#allocation5], 1

</llo_original>
